<compile_context>
chip_gen: v6e
topology: v6e:2x2x1
jax: 0.10.0
libtpu: 0.0.40
codegen_flags: <defaults>
</compile_context>

<pallas_src>
import jax
import jax.numpy as jnp
from jax.experimental import pallas as pl
from jax.experimental.pallas import tpu as pltpu


def _fold_rows_to_8(x):
    """Tree-sum a (Tr, 128) plane down to (8, 128); Tr must be a multiple of 8."""
    rows = x.shape[0]
    parts = [x[i * 8:(i + 1) * 8, :] for i in range(rows // 8)]
    while len(parts) > 1:
        nxt = [parts[i] + parts[i + 1] for i in range(0, len(parts) - 1, 2)]
        if len(parts) % 2:
            nxt.append(parts[-1])
        parts = nxt
    return parts[0]


def _ce_weighted_kernel(x_ref, t_ref, ce_ref, cnt_ref):
    # x_ref   : (1, C, Tr, 128)  logits tile (native dtype, e.g. bf16 / f32)
    # t_ref   : (1, 1, Tr, 128)  int32 targets tile (padded pixels hold C)
    # ce_ref  : (1, C, 8, 128)   f32 per-(image, class) CE partial sums (resident)
    # cnt_ref : (1, C, 8, 128)   f32 per-(image, class) pixel counts     (resident)
    s = pl.program_id(2)

    @pl.when(s == 0)
    def _():
        ce_ref[...] = jnp.zeros(ce_ref.shape, ce_ref.dtype)
        cnt_ref[...] = jnp.zeros(cnt_ref.shape, cnt_ref.dtype)

    C = x_ref.shape[1]
    t = t_ref[0, 0]                                          # (Tr, 128) int32

    # Class planes; upcast to f32 only after the (narrow) DMA.
    xs = [x_ref[0, c].astype(jnp.float32) for c in range(C)]

    # Numerically stable logsumexp over classes: plane-vs-plane VALU / EUP ops.
    m = xs[0]
    for c in range(1, C):
        m = jnp.maximum(m, xs[c])
    ssum = jnp.exp(xs[0] - m)
    for c in range(1, C):
        ssum = ssum + jnp.exp(xs[c] - m)
    lse = jnp.log(ssum) + m                                  # (Tr, 128)

    # Unrolled class loop: no one-hot / iota, no per-pixel ce materialized.
    # Padded pixels carry label == C, so they match no class and add 0.
    for c in range(C):
        mask = (t == c).astype(jnp.float32)                  # (Tr, 128)
        cnt_ref[0, c] += _fold_rows_to_8(mask)
        ce_ref[0, c] += _fold_rows_to_8(mask * (lse - xs[c]))


def cross_entropy_loss_weighted(inputs, targets, n_classes=5, max_rows=512):
    """Forward pass of CrossEntropyLossWeighted.

    inputs : (N, C, H, W) logits (any float dtype; bf16 passes through the DMA
             un-upcast and is converted to f32 inside the kernel)
    targets: (N, H, W) integer labels in [0, C)
    returns: scalar float32 loss matching the PyTorch module
    """
    N, C, H, W = inputs.shape
    assert C == n_classes
    assert targets.shape == (N, H, W)
    HW = H * W

    # ---- lane-dense relayout + padding ----
    max_rows = max(8, (max_rows // 8) * 8)
    R = pl.cdiv(HW, 128)                                 # rows of 128 pixels
    Tr = min(max_rows, ((R + 7) // 8) * 8)               # rows per grid step
    R_pad = ((R + Tr - 1) // Tr) * Tr
    P = R_pad * 128                                      # padded pixel count

    x = inputs.reshape(N, C, HW)                         # native dtype (no upcast)
    t = targets.reshape(N, HW).astype(jnp.int32)
    # TODO(synk): on v5e (HBM-bound) optionally narrow to bf16 logits / uint8 targets here.
    if P != HW:
        # Pad: logits 0 (finite lse), targets = C (out of range) -> zero contribution.
        x = jnp.pad(x, ((0, 0), (0, 0), (0, P - HW)))
        t = jnp.pad(t, ((0, 0), (0, P - HW)), constant_values=C)
    x = x.reshape(N, C, R_pad, 128)
    t = t.reshape(N, 1, R_pad, 128)

    S = R_pad // Tr
    # v7x: with a single image, split the spatial reduction across both
    # TensorCores via a second "parallel" grid axis (halves summed in epilogue).
    split = 2 if (N == 1 and S >= 2 and S % 2 == 0) else 1
    s_inner = S // split

    ce_part, cnt_part = pl.pallas_call(
        _ce_weighted_kernel,
        out_shape=(jax.ShapeDtypeStruct((N * split, C, 8, 128), jnp.float32),
                   jax.ShapeDtypeStruct((N * split, C, 8, 128), jnp.float32)),
        grid_spec=pltpu.PrefetchScalarGridSpec(
            num_scalar_prefetch=0,
            grid=(N, split, s_inner),                    # reduction axis last
            in_specs=[
                pl.BlockSpec((1, C, Tr, 128),
                             lambda n, p, s: (n, 0, p * s_inner + s, 0)),
                pl.BlockSpec((1, 1, Tr, 128),
                             lambda n, p, s: (n, 0, p * s_inner + s, 0)),
            ],
            out_specs=[
                pl.BlockSpec((1, C, 8, 128),
                             lambda n, p, s: (n * split + p, 0, 0, 0)),
                pl.BlockSpec((1, C, 8, 128),
                             lambda n, p, s: (n * split + p, 0, 0, 0)),
            ],
        ),
        compiler_params=pltpu.CompilerParams(
            dimension_semantics=("parallel", "parallel", "arbitrary"),
            vmem_limit_bytes=32 * 1024 * 1024,
        ),
    )(x, t)

    # ---- tiny JAX epilogue (N * split * C * 1024 elements) ----
    ce_sums = jnp.sum(ce_part.reshape(N, split, C, -1), axis=(1, 3))          # (N, C)
    counts_i = jnp.sum(cnt_part.reshape(N, split, C, -1).astype(jnp.int32),
                       axis=(1, 3))                      # integer-exact counts (N, C)
    counts = counts_i.astype(jnp.float32)
    total = jnp.sum(counts_i).astype(jnp.float32)        # == torch.sum(one_hot)
    weights = 1.0 - counts / total                       # (N, C)
    loss_sum = jnp.sum(weights * ce_sums)
    weight_sum = jnp.sum(weights)
    return (loss_sum / (weight_sum * N * H)).astype(jnp.float32)


def _reference(inputs, targets):
    """Pure-JAX reference reproducing the PyTorch forward exactly."""
    N, C, H, W = inputs.shape
    one_hot = jax.nn.one_hot(targets, C, axis=1, dtype=jnp.float32)   # (N,C,H,W)
    weights = 1.0 - jnp.sum(one_hot, axis=(2, 3), keepdims=True) / jnp.sum(one_hot)
    oh = weights * one_hot
    log_probs = jax.nn.log_softmax(inputs.astype(jnp.float32), axis=1)
    ce = -jnp.take_along_axis(log_probs, targets[:, None], axis=1)    # (N,1,H,W)
    loss = ce * oh
    return jnp.sum(loss) / (jnp.sum(weights) * N * H)


if __name__ == "__main__":
    key = jax.random.PRNGKey(0)
    k1, k2, k3, k4 = jax.random.split(key, 4)

    # Case A: small image exercising wrapper-side padding (HW=256 -> 8x128 rows).
    N, C, H, W = 2, 5, 16, 16
    x_a = jax.random.normal(k1, (N, C, H, W), dtype=jnp.float32)
    t_a = jax.random.randint(k2, (N, H, W), 0, C, dtype=jnp.int32)
    out_a = jax.block_until_ready(cross_entropy_loss_weighted(x_a, t_a, n_classes=C))
    ref_a = jax.block_until_ready(_reference(x_a, t_a))
    assert jnp.isfinite(out_a), "kernel produced non-finite loss (case A)"
    assert jnp.allclose(out_a, ref_a, rtol=1e-4, atol=1e-6), (out_a, ref_a)

    # Case B: exercises multi-step accumulation, the row fold and the
    # batch-1 spatial split (small max_rows keeps the data tiny).
    Nb, Cb, Hb, Wb = 1, 5, 128, 128
    x_b = jax.random.normal(k3, (Nb, Cb, Hb, Wb), dtype=jnp.float32)
    t_b = jax.random.randint(k4, (Nb, Hb, Wb), 0, Cb, dtype=jnp.int32)
    out_b = jax.block_until_ready(
        cross_entropy_loss_weighted(x_b, t_b, n_classes=Cb, max_rows=16))
    ref_b = jax.block_until_ready(_reference(x_b, t_b))
    assert jnp.isfinite(out_b), "kernel produced non-finite loss (case B)"
    assert jnp.allclose(out_b, ref_b, rtol=1e-4, atol=1e-6), (out_b, ref_b)

    print("KERNEL_OK")
</pallas_src>

<mosaic_0001>
module attributes {stable_mosaic.version = 11 : i64} {
  func.func @_ce_weighted_kernel(%arg0: i32, %arg1: i32, %arg2: i32, %arg3: memref<1x5x8x128xf32, #tpu.memory_space<vmem>>, %arg4: memref<1x1x8x128xi32, #tpu.memory_space<vmem>>, %arg5: memref<1x5x8x128xf32, #tpu.memory_space<vmem>>, %arg6: memref<1x5x8x128xf32, #tpu.memory_space<vmem>>) attributes {dimension_semantics = [#tpu.dimension_semantics<parallel>, #tpu.dimension_semantics<parallel>, #tpu.dimension_semantics<arbitrary>], iteration_bounds = array<i64: 2, 1, 1>, scalar_prefetch = 0 : i64, scratch_operands = 0 : i64, tpu.core_type = #tpu.core_type<tc>, window_params = [{transform_indices = @transform_0, window_bounds = array<i64: 1, 5, 8, 128>}, {transform_indices = @transform_1, window_bounds = array<i64: 1, 1, 8, 128>}, {transform_indices = @transform_2, window_bounds = array<i64: 1, 5, 8, 128>}, {transform_indices = @transform_3, window_bounds = array<i64: 1, 5, 8, 128>}]} {
    %c0_i32 = arith.constant 0 : i32
    %0 = arith.cmpi eq, %arg2, %c0_i32 : i32
    %1 = arith.extui %0 : i1 to i32
    %c0_i32_0 = arith.constant 0 : i32
    %2 = arith.cmpi ne, %1, %c0_i32_0 : i32
    scf.if %2 {
      %cst = arith.constant 0.000000e+00 : f32
      %125 = vector.broadcast %cst : f32 to vector<1x5x8x128xf32>
      %c0_101 = arith.constant 0 : index
      %c0_102 = arith.constant 0 : index
      %c0_103 = arith.constant 0 : index
      %c0_104 = arith.constant 0 : index
      %126 = vector.load %arg5[%c0_101, %c0_102, %c0_103, %c0_104] : memref<1x5x8x128xf32, #tpu.memory_space<vmem>>, vector<1x5x8x128xf32>
      tpu.vector_store %arg5[%c0_101, %c0_102, %c0_103, %c0_104], %125 {strides = array<i32>} : memref<1x5x8x128xf32, #tpu.memory_space<vmem>>, vector<1x5x8x128xf32>,
      %cst_105 = arith.constant 0.000000e+00 : f32
      %127 = vector.broadcast %cst_105 : f32 to vector<1x5x8x128xf32>
      %c0_106 = arith.constant 0 : index
      %c0_107 = arith.constant 0 : index
      %c0_108 = arith.constant 0 : index
      %c0_109 = arith.constant 0 : index
      %128 = vector.load %arg6[%c0_106, %c0_107, %c0_108, %c0_109] : memref<1x5x8x128xf32, #tpu.memory_space<vmem>>, vector<1x5x8x128xf32>
      tpu.vector_store %arg6[%c0_106, %c0_107, %c0_108, %c0_109], %127 {strides = array<i32>} : memref<1x5x8x128xf32, #tpu.memory_space<vmem>>, vector<1x5x8x128xf32>,
    } else {
    }
    %c0 = arith.constant 0 : index
    %c0_1 = arith.constant 0 : index
    %c0_2 = arith.constant 0 : index
    %c0_3 = arith.constant 0 : index
    %3 = vector.load %arg4[%c0, %c0_1, %c0_2, %c0_3] : memref<1x1x8x128xi32, #tpu.memory_space<vmem>>, vector<1x1x8x128xi32>
    %4 = vector.shape_cast %3 : vector<1x1x8x128xi32> to vector<8x128xi32>
    %c0_4 = arith.constant 0 : index
    %c0_5 = arith.constant 0 : index
    %c0_6 = arith.constant 0 : index
    %c0_7 = arith.constant 0 : index
    %5 = vector.load %arg3[%c0_4, %c0_5, %c0_6, %c0_7] : memref<1x5x8x128xf32, #tpu.memory_space<vmem>>, vector<1x1x8x128xf32>
    %6 = vector.shape_cast %5 : vector<1x1x8x128xf32> to vector<8x128xf32>
    %c0_8 = arith.constant 0 : index
    %c1 = arith.constant 1 : index
    %c0_9 = arith.constant 0 : index
    %c0_10 = arith.constant 0 : index
    %7 = vector.load %arg3[%c0_8, %c1, %c0_9, %c0_10] : memref<1x5x8x128xf32, #tpu.memory_space<vmem>>, vector<1x1x8x128xf32>
    %8 = vector.shape_cast %7 : vector<1x1x8x128xf32> to vector<8x128xf32>
    %c0_11 = arith.constant 0 : index
    %c2 = arith.constant 2 : index
    %c0_12 = arith.constant 0 : index
    %c0_13 = arith.constant 0 : index
    %9 = vector.load %arg3[%c0_11, %c2, %c0_12, %c0_13] : memref<1x5x8x128xf32, #tpu.memory_space<vmem>>, vector<1x1x8x128xf32>
    %10 = vector.shape_cast %9 : vector<1x1x8x128xf32> to vector<8x128xf32>
    %c0_14 = arith.constant 0 : index
    %c3 = arith.constant 3 : index
    %c0_15 = arith.constant 0 : index
    %c0_16 = arith.constant 0 : index
    %11 = vector.load %arg3[%c0_14, %c3, %c0_15, %c0_16] : memref<1x5x8x128xf32, #tpu.memory_space<vmem>>, vector<1x1x8x128xf32>
    %12 = vector.shape_cast %11 : vector<1x1x8x128xf32> to vector<8x128xf32>
    %c0_17 = arith.constant 0 : index
    %c4 = arith.constant 4 : index
    %c0_18 = arith.constant 0 : index
    %c0_19 = arith.constant 0 : index
    %13 = vector.load %arg3[%c0_17, %c4, %c0_18, %c0_19] : memref<1x5x8x128xf32, #tpu.memory_space<vmem>>, vector<1x1x8x128xf32>
    %14 = vector.shape_cast %13 : vector<1x1x8x128xf32> to vector<8x128xf32>
    %15 = arith.maximumf %6, %8 : vector<8x128xf32>
    %16 = arith.maximumf %15, %10 : vector<8x128xf32>
    %17 = arith.maximumf %16, %12 : vector<8x128xf32>
    %18 = arith.maximumf %17, %14 : vector<8x128xf32>
    %19 = arith.subf %6, %18 : vector<8x128xf32>
    %20 = math.exp %19 : vector<8x128xf32>
    %21 = arith.subf %8, %18 : vector<8x128xf32>
    %22 = math.exp %21 : vector<8x128xf32>
    %23 = arith.addf %20, %22 : vector<8x128xf32>
    %24 = arith.subf %10, %18 : vector<8x128xf32>
    %25 = math.exp %24 : vector<8x128xf32>
    %26 = arith.addf %23, %25 : vector<8x128xf32>
    %27 = arith.subf %12, %18 : vector<8x128xf32>
    %28 = math.exp %27 : vector<8x128xf32>
    %29 = arith.addf %26, %28 : vector<8x128xf32>
    %30 = arith.subf %14, %18 : vector<8x128xf32>
    %31 = math.exp %30 : vector<8x128xf32>
    %32 = arith.addf %29, %31 : vector<8x128xf32>
    %33 = math.log %32 : vector<8x128xf32>
    %34 = arith.addf %33, %18 : vector<8x128xf32>
    %c0_i32_20 = arith.constant 0 : i32
    %35 = vector.broadcast %c0_i32_20 : i32 to vector<8x128xi32>
    %36 = arith.cmpi eq, %4, %35 : vector<8x128xi32>
    %37 = arith.extui %36 : vector<8x128xi1> to vector<8x128xi32>
    %38 = arith.sitofp %37 : vector<8x128xi32> to vector<8x128xf32>
    %c0_21 = arith.constant 0 : index
    %c0_22 = arith.constant 0 : index
    %c0_23 = arith.constant 0 : index
    %c0_24 = arith.constant 0 : index
    %39 = vector.load %arg6[%c0_21, %c0_22, %c0_23, %c0_24] : memref<1x5x8x128xf32, #tpu.memory_space<vmem>>, vector<1x1x8x128xf32>
    %40 = vector.shape_cast %39 : vector<1x1x8x128xf32> to vector<8x128xf32>
    %41 = arith.addf %40, %38 : vector<8x128xf32>
    %c0_25 = arith.constant 0 : index
    %c0_26 = arith.constant 0 : index
    %c0_27 = arith.constant 0 : index
    %c0_28 = arith.constant 0 : index
    %42 = vector.load %arg6[%c0_25, %c0_26, %c0_27, %c0_28] : memref<1x5x8x128xf32, #tpu.memory_space<vmem>>, vector<1x1x8x128xf32>
    %43 = vector.shape_cast %42 : vector<1x1x8x128xf32> to vector<8x128xf32>
    %44 = vector.shape_cast %41 : vector<8x128xf32> to vector<1x1x8x128xf32>
    tpu.vector_store %arg6[%c0_25, %c0_26, %c0_27, %c0_28], %44 {strides = array<i32>} : memref<1x5x8x128xf32, #tpu.memory_space<vmem>>, vector<1x1x8x128xf32>,
    %c0_29 = arith.constant 0 : index
    %c0_30 = arith.constant 0 : index
    %c0_31 = arith.constant 0 : index
    %c0_32 = arith.constant 0 : index
    %45 = vector.load %arg5[%c0_29, %c0_30, %c0_31, %c0_32] : memref<1x5x8x128xf32, #tpu.memory_space<vmem>>, vector<1x1x8x128xf32>
    %46 = vector.shape_cast %45 : vector<1x1x8x128xf32> to vector<8x128xf32>
    %47 = arith.subf %34, %6 : vector<8x128xf32>
    %48 = arith.mulf %38, %47 : vector<8x128xf32>
    %49 = arith.addf %46, %48 : vector<8x128xf32>
    %c0_33 = arith.constant 0 : index
    %c0_34 = arith.constant 0 : index
    %c0_35 = arith.constant 0 : index
    %c0_36 = arith.constant 0 : index
    %50 = vector.load %arg5[%c0_33, %c0_34, %c0_35, %c0_36] : memref<1x5x8x128xf32, #tpu.memory_space<vmem>>, vector<1x1x8x128xf32>
    %51 = vector.shape_cast %50 : vector<1x1x8x128xf32> to vector<8x128xf32>
    %52 = vector.shape_cast %49 : vector<8x128xf32> to vector<1x1x8x128xf32>
    tpu.vector_store %arg5[%c0_33, %c0_34, %c0_35, %c0_36], %52 {strides = array<i32>} : memref<1x5x8x128xf32, #tpu.memory_space<vmem>>, vector<1x1x8x128xf32>,
    %c1_i32 = arith.constant 1 : i32
    %53 = vector.broadcast %c1_i32 : i32 to vector<8x128xi32>
    %54 = arith.cmpi eq, %4, %53 : vector<8x128xi32>
    %55 = arith.extui %54 : vector<8x128xi1> to vector<8x128xi32>
    %56 = arith.sitofp %55 : vector<8x128xi32> to vector<8x128xf32>
    %c0_37 = arith.constant 0 : index
    %c1_38 = arith.constant 1 : index
    %c0_39 = arith.constant 0 : index
    %c0_40 = arith.constant 0 : index
    %57 = vector.load %arg6[%c0_37, %c1_38, %c0_39, %c0_40] : memref<1x5x8x128xf32, #tpu.memory_space<vmem>>, vector<1x1x8x128xf32>
    %58 = vector.shape_cast %57 : vector<1x1x8x128xf32> to vector<8x128xf32>
    %59 = arith.addf %58, %56 : vector<8x128xf32>
    %c0_41 = arith.constant 0 : index
    %c1_42 = arith.constant 1 : index
    %c0_43 = arith.constant 0 : index
    %c0_44 = arith.constant 0 : index
    %60 = vector.load %arg6[%c0_41, %c1_42, %c0_43, %c0_44] : memref<1x5x8x128xf32, #tpu.memory_space<vmem>>, vector<1x1x8x128xf32>
    %61 = vector.shape_cast %60 : vector<1x1x8x128xf32> to vector<8x128xf32>
    %62 = vector.shape_cast %59 : vector<8x128xf32> to vector<1x1x8x128xf32>
    tpu.vector_store %arg6[%c0_41, %c1_42, %c0_43, %c0_44], %62 {strides = array<i32>} : memref<1x5x8x128xf32, #tpu.memory_space<vmem>>, vector<1x1x8x128xf32>,
    %c0_45 = arith.constant 0 : index
    %c1_46 = arith.constant 1 : index
    %c0_47 = arith.constant 0 : index
    %c0_48 = arith.constant 0 : index
    %63 = vector.load %arg5[%c0_45, %c1_46, %c0_47, %c0_48] : memref<1x5x8x128xf32, #tpu.memory_space<vmem>>, vector<1x1x8x128xf32>
    %64 = vector.shape_cast %63 : vector<1x1x8x128xf32> to vector<8x128xf32>
    %65 = arith.subf %34, %8 : vector<8x128xf32>
    %66 = arith.mulf %56, %65 : vector<8x128xf32>
    %67 = arith.addf %64, %66 : vector<8x128xf32>
    %c0_49 = arith.constant 0 : index
    %c1_50 = arith.constant 1 : index
    %c0_51 = arith.constant 0 : index
    %c0_52 = arith.constant 0 : index
    %68 = vector.load %arg5[%c0_49, %c1_50, %c0_51, %c0_52] : memref<1x5x8x128xf32, #tpu.memory_space<vmem>>, vector<1x1x8x128xf32>
    %69 = vector.shape_cast %68 : vector<1x1x8x128xf32> to vector<8x128xf32>
    %70 = vector.shape_cast %67 : vector<8x128xf32> to vector<1x1x8x128xf32>
    tpu.vector_store %arg5[%c0_49, %c1_50, %c0_51, %c0_52], %70 {strides = array<i32>} : memref<1x5x8x128xf32, #tpu.memory_space<vmem>>, vector<1x1x8x128xf32>,
    %c2_i32 = arith.constant 2 : i32
    %71 = vector.broadcast %c2_i32 : i32 to vector<8x128xi32>
    %72 = arith.cmpi eq, %4, %71 : vector<8x128xi32>
    %73 = arith.extui %72 : vector<8x128xi1> to vector<8x128xi32>
    %74 = arith.sitofp %73 : vector<8x128xi32> to vector<8x128xf32>
    %c0_53 = arith.constant 0 : index
    %c2_54 = arith.constant 2 : index
    %c0_55 = arith.constant 0 : index
    %c0_56 = arith.constant 0 : index
    %75 = vector.load %arg6[%c0_53, %c2_54, %c0_55, %c0_56] : memref<1x5x8x128xf32, #tpu.memory_space<vmem>>, vector<1x1x8x128xf32>
    %76 = vector.shape_cast %75 : vector<1x1x8x128xf32> to vector<8x128xf32>
    %77 = arith.addf %76, %74 : vector<8x128xf32>
    %c0_57 = arith.constant 0 : index
    %c2_58 = arith.constant 2 : index
    %c0_59 = arith.constant 0 : index
    %c0_60 = arith.constant 0 : index
    %78 = vector.load %arg6[%c0_57, %c2_58, %c0_59, %c0_60] : memref<1x5x8x128xf32, #tpu.memory_space<vmem>>, vector<1x1x8x128xf32>
    %79 = vector.shape_cast %78 : vector<1x1x8x128xf32> to vector<8x128xf32>
    %80 = vector.shape_cast %77 : vector<8x128xf32> to vector<1x1x8x128xf32>
    tpu.vector_store %arg6[%c0_57, %c2_58, %c0_59, %c0_60], %80 {strides = array<i32>} : memref<1x5x8x128xf32, #tpu.memory_space<vmem>>, vector<1x1x8x128xf32>,
    %c0_61 = arith.constant 0 : index
    %c2_62 = arith.constant 2 : index
    %c0_63 = arith.constant 0 : index
    %c0_64 = arith.constant 0 : index
    %81 = vector.load %arg5[%c0_61, %c2_62, %c0_63, %c0_64] : memref<1x5x8x128xf32, #tpu.memory_space<vmem>>, vector<1x1x8x128xf32>
    %82 = vector.shape_cast %81 : vector<1x1x8x128xf32> to vector<8x128xf32>
    %83 = arith.subf %34, %10 : vector<8x128xf32>
    %84 = arith.mulf %74, %83 : vector<8x128xf32>
    %85 = arith.addf %82, %84 : vector<8x128xf32>
    %c0_65 = arith.constant 0 : index
    %c2_66 = arith.constant 2 : index
    %c0_67 = arith.constant 0 : index
    %c0_68 = arith.constant 0 : index
    %86 = vector.load %arg5[%c0_65, %c2_66, %c0_67, %c0_68] : memref<1x5x8x128xf32, #tpu.memory_space<vmem>>, vector<1x1x8x128xf32>
    %87 = vector.shape_cast %86 : vector<1x1x8x128xf32> to vector<8x128xf32>
    %88 = vector.shape_cast %85 : vector<8x128xf32> to vector<1x1x8x128xf32>
    tpu.vector_store %arg5[%c0_65, %c2_66, %c0_67, %c0_68], %88 {strides = array<i32>} : memref<1x5x8x128xf32, #tpu.memory_space<vmem>>, vector<1x1x8x128xf32>,
    %c3_i32 = arith.constant 3 : i32
    %89 = vector.broadcast %c3_i32 : i32 to vector<8x128xi32>
    %90 = arith.cmpi eq, %4, %89 : vector<8x128xi32>
    %91 = arith.extui %90 : vector<8x128xi1> to vector<8x128xi32>
    %92 = arith.sitofp %91 : vector<8x128xi32> to vector<8x128xf32>
    %c0_69 = arith.constant 0 : index
    %c3_70 = arith.constant 3 : index
    %c0_71 = arith.constant 0 : index
    %c0_72 = arith.constant 0 : index
    %93 = vector.load %arg6[%c0_69, %c3_70, %c0_71, %c0_72] : memref<1x5x8x128xf32, #tpu.memory_space<vmem>>, vector<1x1x8x128xf32>
    %94 = vector.shape_cast %93 : vector<1x1x8x128xf32> to vector<8x128xf32>
    %95 = arith.addf %94, %92 : vector<8x128xf32>
    %c0_73 = arith.constant 0 : index
    %c3_74 = arith.constant 3 : index
    %c0_75 = arith.constant 0 : index
    %c0_76 = arith.constant 0 : index
    %96 = vector.load %arg6[%c0_73, %c3_74, %c0_75, %c0_76] : memref<1x5x8x128xf32, #tpu.memory_space<vmem>>, vector<1x1x8x128xf32>
    %97 = vector.shape_cast %96 : vector<1x1x8x128xf32> to vector<8x128xf32>
    %98 = vector.shape_cast %95 : vector<8x128xf32> to vector<1x1x8x128xf32>
    tpu.vector_store %arg6[%c0_73, %c3_74, %c0_75, %c0_76], %98 {strides = array<i32>} : memref<1x5x8x128xf32, #tpu.memory_space<vmem>>, vector<1x1x8x128xf32>,
    %c0_77 = arith.constant 0 : index
    %c3_78 = arith.constant 3 : index
    %c0_79 = arith.constant 0 : index
    %c0_80 = arith.constant 0 : index
    %99 = vector.load %arg5[%c0_77, %c3_78, %c0_79, %c0_80] : memref<1x5x8x128xf32, #tpu.memory_space<vmem>>, vector<1x1x8x128xf32>
    %100 = vector.shape_cast %99 : vector<1x1x8x128xf32> to vector<8x128xf32>
    %101 = arith.subf %34, %12 : vector<8x128xf32>
    %102 = arith.mulf %92, %101 : vector<8x128xf32>
    %103 = arith.addf %100, %102 : vector<8x128xf32>
    %c0_81 = arith.constant 0 : index
    %c3_82 = arith.constant 3 : index
    %c0_83 = arith.constant 0 : index
    %c0_84 = arith.constant 0 : index
    %104 = vector.load %arg5[%c0_81, %c3_82, %c0_83, %c0_84] : memref<1x5x8x128xf32, #tpu.memory_space<vmem>>, vector<1x1x8x128xf32>
    %105 = vector.shape_cast %104 : vector<1x1x8x128xf32> to vector<8x128xf32>
    %106 = vector.shape_cast %103 : vector<8x128xf32> to vector<1x1x8x128xf32>
    tpu.vector_store %arg5[%c0_81, %c3_82, %c0_83, %c0_84], %106 {strides = array<i32>} : memref<1x5x8x128xf32, #tpu.memory_space<vmem>>, vector<1x1x8x128xf32>,
    %c4_i32 = arith.constant 4 : i32
    %107 = vector.broadcast %c4_i32 : i32 to vector<8x128xi32>
    %108 = arith.cmpi eq, %4, %107 : vector<8x128xi32>
    %109 = arith.extui %108 : vector<8x128xi1> to vector<8x128xi32>
    %110 = arith.sitofp %109 : vector<8x128xi32> to vector<8x128xf32>
    %c0_85 = arith.constant 0 : index
    %c4_86 = arith.constant 4 : index
    %c0_87 = arith.constant 0 : index
    %c0_88 = arith.constant 0 : index
    %111 = vector.load %arg6[%c0_85, %c4_86, %c0_87, %c0_88] : memref<1x5x8x128xf32, #tpu.memory_space<vmem>>, vector<1x1x8x128xf32>
    %112 = vector.shape_cast %111 : vector<1x1x8x128xf32> to vector<8x128xf32>
    %113 = arith.addf %112, %110 : vector<8x128xf32>
    %c0_89 = arith.constant 0 : index
    %c4_90 = arith.constant 4 : index
    %c0_91 = arith.constant 0 : index
    %c0_92 = arith.constant 0 : index
    %114 = vector.load %arg6[%c0_89, %c4_90, %c0_91, %c0_92] : memref<1x5x8x128xf32, #tpu.memory_space<vmem>>, vector<1x1x8x128xf32>
    %115 = vector.shape_cast %114 : vector<1x1x8x128xf32> to vector<8x128xf32>
    %116 = vector.shape_cast %113 : vector<8x128xf32> to vector<1x1x8x128xf32>
    tpu.vector_store %arg6[%c0_89, %c4_90, %c0_91, %c0_92], %116 {strides = array<i32>} : memref<1x5x8x128xf32, #tpu.memory_space<vmem>>, vector<1x1x8x128xf32>,
    %c0_93 = arith.constant 0 : index
    %c4_94 = arith.constant 4 : index
    %c0_95 = arith.constant 0 : index
    %c0_96 = arith.constant 0 : index
    %117 = vector.load %arg5[%c0_93, %c4_94, %c0_95, %c0_96] : memref<1x5x8x128xf32, #tpu.memory_space<vmem>>, vector<1x1x8x128xf32>
    %118 = vector.shape_cast %117 : vector<1x1x8x128xf32> to vector<8x128xf32>
    %119 = arith.subf %34, %14 : vector<8x128xf32>
    %120 = arith.mulf %110, %119 : vector<8x128xf32>
    %121 = arith.addf %118, %120 : vector<8x128xf32>
    %c0_97 = arith.constant 0 : index
    %c4_98 = arith.constant 4 : index
    %c0_99 = arith.constant 0 : index
    %c0_100 = arith.constant 0 : index
    %122 = vector.load %arg5[%c0_97, %c4_98, %c0_99, %c0_100] : memref<1x5x8x128xf32, #tpu.memory_space<vmem>>, vector<1x1x8x128xf32>
    %123 = vector.shape_cast %122 : vector<1x1x8x128xf32> to vector<8x128xf32>
    %124 = vector.shape_cast %121 : vector<8x128xf32> to vector<1x1x8x128xf32>
    tpu.vector_store %arg5[%c0_97, %c4_98, %c0_99, %c0_100], %124 {strides = array<i32>} : memref<1x5x8x128xf32, #tpu.memory_space<vmem>>, vector<1x1x8x128xf32>,
    return
  }
  func.func @transform_0(%arg0: i32, %arg1: i32, %arg2: i32) -> (i32, i32, i32, i32) {
    %c1_i32 = arith.constant 1 : i32
    %0 = arith.muli %arg1, %c1_i32 : i32
    %1 = arith.addi %0, %arg2 : i32
    %c0_i32 = arith.constant 0 : i32
    %c0_i32_0 = arith.constant 0 : i32
    %c0_i32_1 = arith.constant 0 : i32
    return %arg0, %c0_i32, %1, %c0_i32_0 : i32, i32, i32, i32
  }
  func.func @transform_1(%arg0: i32, %arg1: i32, %arg2: i32) -> (i32, i32, i32, i32) {
    %c1_i32 = arith.constant 1 : i32
    %0 = arith.muli %arg1, %c1_i32 : i32
    %1 = arith.addi %0, %arg2 : i32
    %c0_i32 = arith.constant 0 : i32
    %c0_i32_0 = arith.constant 0 : i32
    %c0_i32_1 = arith.constant 0 : i32
    return %arg0, %c0_i32, %1, %c0_i32_0 : i32, i32, i32, i32
  }
  func.func @transform_2(%arg0: i32, %arg1: i32, %arg2: i32) -> (i32, i32, i32, i32) {
    %c1_i32 = arith.constant 1 : i32
    %0 = arith.muli %arg0, %c1_i32 : i32
    %1 = arith.addi %0, %arg1 : i32
    %c0_i32 = arith.constant 0 : i32
    %c0_i32_0 = arith.constant 0 : i32
    %c0_i32_1 = arith.constant 0 : i32
    %c0_i32_2 = arith.constant 0 : i32
    return %1, %c0_i32, %c0_i32_0, %c0_i32_1 : i32, i32, i32, i32
  }
  func.func @transform_3(%arg0: i32, %arg1: i32, %arg2: i32) -> (i32, i32, i32, i32) {
    %c1_i32 = arith.constant 1 : i32
    %0 = arith.muli %arg0, %c1_i32 : i32
    %1 = arith.addi %0, %arg1 : i32
    %c0_i32 = arith.constant 0 : i32
    %c0_i32_0 = arith.constant 0 : i32
    %c0_i32_1 = arith.constant 0 : i32
    %c0_i32_2 = arith.constant 0 : i32
    return %1, %c0_i32, %c0_i32_0, %c0_i32_1 : i32, i32, i32, i32
  }
}

</mosaic_0001>

<llo_original>
// kernel: tpu_custom_call.1
$region0: #{tpu_custom_call.1}
  #allocation0 [shape = 'u32[]', space=smem, size = 0x4, offset = 0x4, fixed_abs, tag = 'smem constant byte address 0x4 - core index']
  #allocation1 [shape = 'u32[144,128]{1,0:T(1,128)}', space=vmem, size = 0x12000, scoped, tag = 'internal scratch']
  %s0 = inlined_call_operand.hbm [shape: f32[2,5,8,128], index: 0, kind: input, shape index: {}]
  %s1 = inlined_call_operand.hbm [shape: s32[2,1,8,128], index: 1, kind: input, shape index: {}]
  %s2 = inlined_call_operand.hbm [shape: f32[2,5,8,128], index: 2, kind: output, shape index: {0}]
  %s3 = inlined_call_operand.hbm [shape: f32[2,5,8,128], index: 3, kind: output, shape index: {1}]
  %4 = xla_tuple %s2, %s3
  %s5 = sld [smem:[#allocation0]]
  $region61: #{tpu_custom_call.1} parent=0
    _
  %s7 = ssub.s32 1, %s5
  %s8 = scalar_select 0, %s7, %s5
  $region1: #{tpu_custom_call.1} parent=0
    #allocation2 [shape = 'u8[40960]{0}', space=vmem, size = 0xa000, scoped, tag = 'input window, operand 0']
    #allocation3 [shape = 's32[2]{0}', space=sflag, size = 0x8, scoped, tag = 'scoped memory for tpu_custom_call.1']
    #allocation4 [shape = 's32[2]{0}', space=sflag, size = 0x8, scoped, tag = 'scoped memory for tpu_custom_call.1']
    #allocation5 [shape = 'u8[8192]{0}', space=vmem, size = 0x2000, scoped, tag = 'input window, operand 1']
    #allocation6 [shape = 's32[2]{0}', space=sflag, size = 0x8, scoped, tag = 'scoped memory for tpu_custom_call.1']
    #allocation7 [shape = 'u8[40960]{0}', space=vmem, size = 0xa000, scoped, tag = 'output window, operand 0']
    #allocation8 [shape = 'u8[40960]{0}', space=vmem, size = 0xa000, scoped, tag = 'output window, operand 1']
    #allocation9 [shape = 's32[2]{0}', space=sflag, size = 0x8, scoped, tag = 'scoped memory for tpu_custom_call.1']
    %9 = vsyncpa [#allocation3], 0
    %s10 = scalar_lea.sflag [#allocation3], 1
    %11 = vsyncpa %s10, 0
    %12 = vsyncpa [#allocation6], 0
    %s13 = scalar_lea.sflag [#allocation6], 1
    %14 = vsyncpa %s13, 0
    %15 = vsyncpa [#allocation4], 0
    %s16 = scalar_lea.sflag [#allocation4], 1
    %17 = vsyncpa %s16, 0
    %18 = vsyncpa [#allocation9], 0
    %s19 = scalar_lea.sflag [#allocation9], 1
    %20 = vsyncpa %s19, 0
    loop: start=0, step=1, limit=4
    $region2: #{tpu_custom_call.1} parent=1 // loop_pre_header
      _
    $region3: #{tpu_custom_call.1} parent=1 // loop_header
      %s22 = sphi 0, %s26
      %p23 = scmp.ge.s32.totalorder %s22, 4
      %s29 = sphi 0, %s48
      %s30 = sphi 0, %s44
      %s31 = sphi 0, %s40
      %s32 = sphi 0, %s29
      %s33 = sphi 0, %s30
      %s34 = sphi 0, %s31
      %s35 = sphi 0, %s32
      %s36 = sphi 0, %s33
      %s37 = sphi 0, %s34
      %s55 = sphi 0, %s57
      %s58 = sphi 0, %s55
      %s59 = sphi 0, %s58
      %s75 = sphi 0, %s59
      %s85 = sphi 0, %s87
      %s88 = sphi 0, %s85
      %s89 = sphi 0, %s88
      %s105 = sphi 0, %s89
      %s113 = sphi 0, %s115
      %s116 = sphi 0, %s113
      %s117 = sphi 0, %s116
      %s133 = sphi 0, %s117
      %s141 = sphi 0, %s143
      %s144 = sphi 0, %s141
      %s145 = sphi 0, %s144
      %s161 = sphi 0, %s145
    $region4: #{tpu_custom_call.1} parent=1 // loop_header_branch
      %25 = sbr.rel (%p23) target = $region8
    $region5: #{tpu_custom_call.1} parent=1 // loop_body
      %s27 = ssub.s32 %s22, 1
      %s28 = ssub.s32 %s22, 2
      %s38 = sadd.s32 1, %s31
      %p39 = scmp.ge.s32.totalorder %s38, 1
      %s40 = scalar_select %p39, 0, %s38
      %s41 = sadd.s32 1, %s30
      %s42 = scalar_select %p39, %s41, %s30
      %p43 = scmp.ge.s32.totalorder %s42, 1
      %s44 = scalar_select %p43, 0, %s42
      %s45 = sadd.s32 1, %s29
      %s46 = scalar_select %p43, %s45, %s29
      %p47 = scmp.ge.s32.totalorder %s46, 2
      %s48 = scalar_select %p47, 0, %s46
      %s49 = sadd.s32 %s30, %s31
      %s50 = sadd.s32 %s44, %s40
      %s51 = ssub.s32 %s29, %s48
      %s52 = ssub.s32 %s49, %s50
      %s53 = sor.u32 %s51, %s52
      %p54 = scmp.eq.s32.totalorder %s53, 0
      %s56 = sadd.s32 %s55, 1
      %s57 = scalar_select %p54, %s55, %s56
      %p60 = pneg %p54
      %p61 = scmp.eq.s32.totalorder %s22, 1
      %p62 = por %p60, %p61
      %p63 = scmp.ne.s32.totalorder %s55, %s58
      %p64 = scmp.eq.s32.totalorder %s22, 0
      %p65 = por %p63, %p64
      %p66 = scmp.ne.s32.totalorder %s55, %s58
      %p67 = scmp.eq.s32.totalorder %s27, 1
      %p68 = por %p66, %p67
      %p69 = scmp.ne.s32.totalorder %s58, %s59
      %p70 = scmp.eq.s32.totalorder %s27, 0
      %p71 = por %p69, %p70
      %p72 = scmp.ne.s32.totalorder %s58, %s59
      %p73 = scmp.eq.s32.totalorder %s28, 1
      %p74 = por %p72, %p73
      %p76 = scmp.ne.s32.totalorder %s59, %s75
      %p77 = scmp.eq.s32.totalorder %s28, 0
      %p78 = por %p76, %p77
      %s79 = sadd.s32 %s30, %s31
      %s80 = sadd.s32 %s44, %s40
      %s81 = ssub.s32 %s29, %s48
      %s82 = ssub.s32 %s79, %s80
      %s83 = sor.u32 %s81, %s82
      %p84 = scmp.eq.s32.totalorder %s83, 0
      %s86 = sadd.s32 %s85, 1
      %s87 = scalar_select %p84, %s85, %s86
      %p90 = pneg %p84
      %p91 = scmp.eq.s32.totalorder %s22, 1
      %p92 = por %p90, %p91
      %p93 = scmp.ne.s32.totalorder %s85, %s88
      %p94 = scmp.eq.s32.totalorder %s22, 0
      %p95 = por %p93, %p94
      %p96 = scmp.ne.s32.totalorder %s85, %s88
      %p97 = scmp.eq.s32.totalorder %s27, 1
      %p98 = por %p96, %p97
      %p99 = scmp.ne.s32.totalorder %s88, %s89
      %p100 = scmp.eq.s32.totalorder %s27, 0
      %p101 = por %p99, %p100
      %p102 = scmp.ne.s32.totalorder %s88, %s89
      %p103 = scmp.eq.s32.totalorder %s28, 1
      %p104 = por %p102, %p103
      %p106 = scmp.ne.s32.totalorder %s89, %s105
      %p107 = scmp.eq.s32.totalorder %s28, 0
      %p108 = por %p106, %p107
      %s109 = sadd.s32 %s29, %s30
      %s110 = sadd.s32 %s48, %s44
      %s111 = ssub.s32 %s109, %s110
      %p112 = scmp.eq.s32.totalorder %s111, 0
      %s114 = sadd.s32 %s113, 1
      %s115 = scalar_select %p112, %s113, %s114
      %p118 = pneg %p112
      %p119 = scmp.eq.s32.totalorder %s22, 1
      %p120 = por %p118, %p119
      %p121 = scmp.ne.s32.totalorder %s113, %s116
      %p122 = scmp.eq.s32.totalorder %s22, 0
      %p123 = por %p121, %p122
      %p124 = scmp.ne.s32.totalorder %s113, %s116
      %p125 = scmp.eq.s32.totalorder %s27, 1
      %p126 = por %p124, %p125
      %p127 = scmp.ne.s32.totalorder %s116, %s117
      %p128 = scmp.eq.s32.totalorder %s27, 0
      %p129 = por %p127, %p128
      %p130 = scmp.ne.s32.totalorder %s116, %s117
      %p131 = scmp.eq.s32.totalorder %s28, 1
      %p132 = por %p130, %p131
      %p134 = scmp.ne.s32.totalorder %s117, %s133
      %p135 = scmp.eq.s32.totalorder %s28, 0
      %p136 = por %p134, %p135
      %s137 = sadd.s32 %s29, %s30
      %s138 = sadd.s32 %s48, %s44
      %s139 = ssub.s32 %s137, %s138
      %p140 = scmp.eq.s32.totalorder %s139, 0
      %s142 = sadd.s32 %s141, 1
      %s143 = scalar_select %p140, %s141, %s142
      %p146 = pneg %p140
      %p147 = scmp.eq.s32.totalorder %s22, 1
      %p148 = por %p146, %p147
      %p149 = scmp.ne.s32.totalorder %s141, %s144
      %p150 = scmp.eq.s32.totalorder %s22, 0
      %p151 = por %p149, %p150
      %p152 = scmp.ne.s32.totalorder %s141, %s144
      %p153 = scmp.eq.s32.totalorder %s27, 1
      %p154 = por %p152, %p153
      %p155 = scmp.ne.s32.totalorder %s144, %s145
      %p156 = scmp.eq.s32.totalorder %s27, 0
      %p157 = por %p155, %p156
      %p158 = scmp.ne.s32.totalorder %s144, %s145
      %p159 = scmp.eq.s32.totalorder %s28, 1
      %p160 = por %p158, %p159
      %p162 = scmp.ne.s32.totalorder %s145, %s161
      %p163 = scmp.eq.s32.totalorder %s28, 0
      %p164 = por %p162, %p163
      %p165 = scmp.le.s32.totalorder 1, %s22
      %p166 = scmp.lt.s32.totalorder %s22, 3
      %p167 = pnand %p165, %p166
      %p168 = pneg %p167
      // Predicated region
      $region9: #{tpu_custom_call.1} parent=5 // pred_check
        _
      $region10: #{tpu_custom_call.1} parent=5 // pred_check_branch
        %170 = sbr.rel (%p167) target = $region12
      $region11: #{tpu_custom_call.1} parent=5 // pred_region
        %s171 = ssub.s32 %s22, 1
      $region12: #{tpu_custom_call.1} parent=5 // pred_fallthru
        _
      %p172 = scmp.lt.s32.totalorder %s22, 2
      // Predicated region
      $region13: #{tpu_custom_call.1} parent=5 // pred_check
        %p173 = pneg %p172
      $region14: #{tpu_custom_call.1} parent=5 // pred_check_branch
        %175 = sbr.rel (%p173) target = $region16
      $region15: #{tpu_custom_call.1} parent=5 // pred_region
        // Predicated region
        $region17: #{tpu_custom_call.1} parent=15 // pred_check
          %p176 = pneg %p65
        $region18: #{tpu_custom_call.1} parent=15 // pred_check_branch
          %178 = sbr.rel (%p176) target = $region20
        $region19: #{tpu_custom_call.1} parent=15 // pred_region
          %s179 = sand.u32 %s55, 1
          %s180 = scalar_lea.sflag [#allocation3], %s179
          %s181 = sand.u32 %s55, 1
          %s182 = smul.addr %s181, 40
          %s183 = scalar_lea.vmem [#allocation2], %s182
          %s184 = sadd.s32 %s30, %s31
          %s186 = ssub.s32 640, 640
          %187 = vsyncadd %s180, %s186
          %s188 = smul.addr %s29, 5
          %s189 = sadd.s32 %s184, %s188
          %s190 = smul.addr %s189, 128
          %s191 = scalar_lea.hbm %s0, %s190
          %s192 = sshll.u32 %s183, 4
          %s193 = int_to_ptr.vmem [resolvable:$true] %s192
          %198 = dma.hbm_to_vmem [thread:$0]  %s191, 640, %s193, %s180, 128, 128, 8
        $region20: #{tpu_custom_call.1} parent=15 // pred_fallthru
          _
        // Predicated region
        $region21: #{tpu_custom_call.1} parent=15 // pred_check
          %p199 = pneg %p95
        $region22: #{tpu_custom_call.1} parent=15 // pred_check_branch
          %201 = sbr.rel (%p199) target = $region24
        $region23: #{tpu_custom_call.1} parent=15 // pred_region
          %s202 = sand.u32 %s85, 1
          %s203 = scalar_lea.sflag [#allocation6], %s202
          %s204 = sand.u32 %s85, 1
          %s205 = smul.addr %s204, 8
          %s206 = scalar_lea.vmem [#allocation5], %s205
          %s207 = sadd.s32 %s30, %s31
          %s209 = ssub.s32 128, 128
          %210 = vsyncadd %s203, %s209
          %s211 = sadd.s32 %s207, %s29
          %s212 = smul.addr %s211, 128
          %s213 = scalar_lea.hbm %s1, %s212
          %s215 = sshll.u32 %s206, 4
          %s216 = int_to_ptr.vmem [resolvable:$true] %s215
          %218 = dma.hbm_to_vmem [thread:$0]  %s213, 128, %s216, %s203
        $region24: #{tpu_custom_call.1} parent=15 // pred_fallthru
          _
      $region16: #{tpu_custom_call.1} parent=5 // pred_fallthru
        _
      %p219 = scmp.le.s32.totalorder 1, %s22
      %p220 = scmp.lt.s32.totalorder %s22, 3
      %p221 = pnand %p219, %p220
      %p222 = pneg %p221
      // Predicated region
      $region25: #{tpu_custom_call.1} parent=5 // pred_check
        _
      $region26: #{tpu_custom_call.1} parent=5 // pred_check_branch
        %224 = sbr.rel (%p221) target = $region28
      $region27: #{tpu_custom_call.1} parent=5 // pred_region
        %s225 = ssub.s32 %s22, 1
        %s226 = sand.u32 %s58, 1
        %s227 = scalar_lea.sflag [#allocation3], %s226
        %s228 = sand.u32 %s58, 1
        %s229 = smul.addr %s228, 40
        %s230 = scalar_lea.vmem [#allocation2], %s229
        // Predicated region
        $region29: #{tpu_custom_call.1} parent=27 // pred_check
          %p231 = pneg %p71
        $region30: #{tpu_custom_call.1} parent=27 // pred_check_branch
          %233 = sbr.rel (%p231) target = $region32
        $region31: #{tpu_custom_call.1} parent=27 // pred_region
          %234 = dma.done %s227, 640
        $region32: #{tpu_custom_call.1} parent=27 // pred_fallthru
          _
        %s235 = sand.u32 %s88, 1
        %s236 = scalar_lea.sflag [#allocation6], %s235
        %s237 = sand.u32 %s88, 1
        %s238 = smul.addr %s237, 8
        %s239 = scalar_lea.vmem [#allocation5], %s238
        // Predicated region
        $region33: #{tpu_custom_call.1} parent=27 // pred_check
          %p240 = pneg %p101
        $region34: #{tpu_custom_call.1} parent=27 // pred_check_branch
          %242 = sbr.rel (%p240) target = $region36
        $region35: #{tpu_custom_call.1} parent=27 // pred_region
          %243 = dma.done %s236, 128
        $region36: #{tpu_custom_call.1} parent=27 // pred_fallthru
          _
        %s244 = sand.u32 %s58, 1
        %s245 = scalar_lea.sflag [#allocation3], %s244
        %s246 = sand.u32 %s58, 1
        %s247 = smul.addr %s246, 40
        %s248 = scalar_lea.vmem [#allocation2], %s247
        %p249 = pneg %p71
        %p250 = pneg %p68
        %s251 = sand.u32 %s88, 1
        %s252 = scalar_lea.sflag [#allocation6], %s251
        %s253 = sand.u32 %s88, 1
        %s254 = smul.addr %s253, 8
        %s255 = scalar_lea.vmem [#allocation5], %s254
        %p256 = pneg %p101
        %p257 = pneg %p98
        %p258 = pneg %p129
        %p259 = pneg %p126
        %s260 = sand.u32 %s116, 1
        %s261 = scalar_lea.sflag [#allocation4], %s260
        %s262 = sand.u32 %s116, 1
        %s263 = smul.addr %s262, 40
        %s264 = scalar_lea.vmem [#allocation7], %s263
        %p265 = pneg %p157
        %p266 = pneg %p154
        %s267 = sand.u32 %s144, 1
        %s268 = scalar_lea.sflag [#allocation9], %s267
        %s269 = sand.u32 %s144, 1
        %s270 = smul.addr %s269, 40
        %s271 = scalar_lea.vmem [#allocation8], %s270
        %s272 = sadd.s32 %s33, %s34
        %s273 = sadd.s32 %s33, %s34
        %s274 = sadd.s32 %s32, %s33
        %s275 = sadd.s32 %s32, %s33
        %p276 = scmp.eq.s32.totalorder %s34, 0
        // Predicated region
        $region37: #{tpu_custom_call.1} parent=27 // pred_check
          %p277 = pneg %p276
        $region38: #{tpu_custom_call.1} parent=27 // pred_check_branch
          %279 = sbr.rel (%p277) target = $region40
        $region39: #{tpu_custom_call.1} parent=27 // pred_region
          %280 = vst [vmem:[%s264] sm:$0xff] 0.0
          %281 = vst [vmem:[%s264 + $0x8] sm:$0xff] 0.0
          %282 = vst [vmem:[%s264 + $0x10] sm:$0xff] 0.0
          %283 = vst [vmem:[%s264 + $0x18] sm:$0xff] 0.0
          %284 = vst [vmem:[%s264 + $0x20] sm:$0xff] 0.0
          %285 = vst [vmem:[%s271] sm:$0xff] 0.0
          %286 = vst [vmem:[%s271 + $0x8] sm:$0xff] 0.0
          %287 = vst [vmem:[%s271 + $0x10] sm:$0xff] 0.0
          %288 = vst [vmem:[%s271 + $0x18] sm:$0xff] 0.0
          %289 = vst [vmem:[%s271 + $0x20] sm:$0xff] 0.0
        $region40: #{tpu_custom_call.1} parent=27 // pred_fallthru
          _
        %v290 = vld [vmem:[%s239] sm:$0xff]
        %v291 = vld [vmem:[%s230] sm:$0xff]
        %s292 = scalar_lea.vmem %s230, 8 [#allocation2]
        %v293 = vld [vmem:[%s292] sm:$0xff]
        %s294 = scalar_lea.vmem %s230, 16 [#allocation2]
        %v295 = vld [vmem:[%s294] sm:$0xff]
        %s296 = scalar_lea.vmem %s230, 24 [#allocation2]
        %v297 = vld [vmem:[%s296] sm:$0xff]
        %s298 = scalar_lea.vmem %s230, 32 [#allocation2]
        %v299 = vld [vmem:[%s298] sm:$0xff]
        %v300 = vmax.f32 %v291, %v293
        %v301 = vmax.f32 %v300, %v295
        %v302 = vmax.f32 %v301, %v297
        %v303 = vmax.f32 %v302, %v299
        %v304 = vsub.f32 %v291, %v303
        %v305 = vmul.f32 %v304, 1.442695
        %v306 = vpow.pop %v305
        %v307 = vsub.f32 %v293, %v303
        %v308 = vmul.f32 %v307, 1.442695
        %v309 = vpow.pop %v308
        %v310 = vadd.f32 %v306, %v309
        %v311 = vsub.f32 %v295, %v303
        %v312 = vmul.f32 %v311, 1.442695
        %v313 = vpow.pop %v312
        %v314 = vadd.f32 %v310, %v313
        %v315 = vsub.f32 %v297, %v303
        %v316 = vmul.f32 %v315, 1.442695
        %v317 = vpow.pop %v316
        %v318 = vadd.f32 %v314, %v317
        %v319 = vsub.f32 %v299, %v303
        %v320 = vmul.f32 %v319, 1.442695
        %v321 = vpow.pop %v320
        %v322 = vadd.f32 %v318, %v321
        %v323 = vlog2.pop %v322
        %v324 = vmul.f32 %v323, 0.6931472
        %v325 = vadd.f32 %v324, %v303
        %vm326 = vcmp.eq.s32.totalorder %v290, 0
        %v327 = vsel %vm326, 1, 0
        %v328 = vcvt.s32.f32 %v327
        %v329 = vld [vmem:[%s271] sm:$0xff]
        %v330 = vadd.f32 %v329, %v328
        %331 = vst [vmem:[%s271] sm:$0xff] %v330
        %v332 = vld [vmem:[%s264] sm:$0xff]
        %v333 = vsub.f32 %v325, %v291
        %v334 = vmul.f32 %v328, %v333
        %v335 = vadd.f32 %v332, %v334
        %336 = vst [vmem:[%s264] sm:$0xff] %v335
        %vm337 = vcmp.eq.s32.totalorder %v290, 1
        %v338 = vsel %vm337, 1, 0
        %v339 = vcvt.s32.f32 %v338
        %s340 = scalar_lea.vmem %s271, 8 [#allocation8]
        %v341 = vld [vmem:[%s340] sm:$0xff]
        %v342 = vadd.f32 %v341, %v339
        %343 = vst [vmem:[%s340] sm:$0xff] %v342
        %s344 = scalar_lea.vmem %s264, 8 [#allocation7]
        %v345 = vld [vmem:[%s344] sm:$0xff]
        %v346 = vsub.f32 %v325, %v293
        %v347 = vmul.f32 %v339, %v346
        %v348 = vadd.f32 %v345, %v347
        %349 = vst [vmem:[%s344] sm:$0xff] %v348
        %vm350 = vcmp.eq.s32.totalorder %v290, 2
        %v351 = vsel %vm350, 1, 0
        %v352 = vcvt.s32.f32 %v351
        %s353 = scalar_lea.vmem %s271, 16 [#allocation8]
        %v354 = vld [vmem:[%s353] sm:$0xff]
        %v355 = vadd.f32 %v354, %v352
        %356 = vst [vmem:[%s353] sm:$0xff] %v355
        %s357 = scalar_lea.vmem %s264, 16 [#allocation7]
        %v358 = vld [vmem:[%s357] sm:$0xff]
        %v359 = vsub.f32 %v325, %v295
        %v360 = vmul.f32 %v352, %v359
        %v361 = vadd.f32 %v358, %v360
        %362 = vst [vmem:[%s357] sm:$0xff] %v361
        %vm363 = vcmp.eq.s32.totalorder %v290, 3
        %v364 = vsel %vm363, 1, 0
        %v365 = vcvt.s32.f32 %v364
        %s366 = scalar_lea.vmem %s271, 24 [#allocation8]
        %v367 = vld [vmem:[%s366] sm:$0xff]
        %v368 = vadd.f32 %v367, %v365
        %369 = vst [vmem:[%s366] sm:$0xff] %v368
        %s370 = scalar_lea.vmem %s264, 24 [#allocation7]
        %v371 = vld [vmem:[%s370] sm:$0xff]
        %v372 = vsub.f32 %v325, %v297
        %v373 = vmul.f32 %v365, %v372
        %v374 = vadd.f32 %v371, %v373
        %375 = vst [vmem:[%s370] sm:$0xff] %v374
        %vm376 = vcmp.eq.s32.totalorder %v290, 4
        %v377 = vsel %vm376, 1, 0
        %v378 = vcvt.s32.f32 %v377
        %s379 = scalar_lea.vmem %s271, 32 [#allocation8]
        %v380 = vld [vmem:[%s379] sm:$0xff]
        %v381 = vadd.f32 %v380, %v378
        %382 = vst [vmem:[%s379] sm:$0xff] %v381
        %s383 = scalar_lea.vmem %s264, 32 [#allocation7]
        %v384 = vld [vmem:[%s383] sm:$0xff]
        %v385 = vsub.f32 %v325, %v299
        %v386 = vmul.f32 %v378, %v385
        %v387 = vadd.f32 %v384, %v386
        %388 = vst [vmem:[%s383] sm:$0xff] %v387
        %s389 = sand.u32 %s116, 1
        %s390 = scalar_lea.sflag [#allocation4], %s389
        %s391 = sand.u32 %s116, 1
        %s392 = smul.addr %s391, 40
        %s393 = scalar_lea.vmem [#allocation7], %s392
        %s394 = sand.u32 %s144, 1
        %s395 = scalar_lea.sflag [#allocation9], %s394
        %s396 = sand.u32 %s144, 1
        %s397 = smul.addr %s396, 40
        %s398 = scalar_lea.vmem [#allocation8], %s397
        // Predicated region
        $region41: #{tpu_custom_call.1} parent=27 // pred_check
          %p399 = pneg %p126
        $region42: #{tpu_custom_call.1} parent=27 // pred_check_branch
          %401 = sbr.rel (%p399) target = $region44
        $region43: #{tpu_custom_call.1} parent=27 // pred_region
          %s402 = sadd.s32 %s32, %s33
          %s404 = ssub.s32 640, 640
          %405 = vsyncadd %s390, %s404
          %s406 = smul.addr %s402, 5
          %s407 = smul.addr %s406, 128
          %s408 = scalar_lea.hbm %s2, %s407
          %s409 = sshll.u32 %s393, 4
          %s410 = int_to_ptr.vmem [resolvable:$true] %s409
          %415 = dma.vmem_to_hbm [thread:$0]  %s410, 640, %s408, %s390, 128, 128, 8
        $region44: #{tpu_custom_call.1} parent=27 // pred_fallthru
          _
        // Predicated region
        $region45: #{tpu_custom_call.1} parent=27 // pred_check
          %p416 = pneg %p154
        $region46: #{tpu_custom_call.1} parent=27 // pred_check_branch
          %418 = sbr.rel (%p416) target = $region48
        $region47: #{tpu_custom_call.1} parent=27 // pred_region
          %s419 = sadd.s32 %s32, %s33
          %s421 = ssub.s32 640, 640
          %422 = vsyncadd %s395, %s421
          %s423 = smul.addr %s419, 5
          %s424 = smul.addr %s423, 128
          %s425 = scalar_lea.hbm %s3, %s424
          %s426 = sshll.u32 %s398, 4
          %s427 = int_to_ptr.vmem [resolvable:$true] %s426
          %432 = dma.vmem_to_hbm [thread:$0]  %s427, 640, %s425, %s395, 128, 128, 8
        $region48: #{tpu_custom_call.1} parent=27 // pred_fallthru
          _
      $region28: #{tpu_custom_call.1} parent=5 // pred_fallthru
        _
      %p433 = scmp.le.s32.totalorder 2, %s22
      // Predicated region
      $region49: #{tpu_custom_call.1} parent=5 // pred_check
        %p434 = pneg %p433
      $region50: #{tpu_custom_call.1} parent=5 // pred_check_branch
        %436 = sbr.rel (%p434) target = $region52
      $region51: #{tpu_custom_call.1} parent=5 // pred_region
        %s437 = ssub.s32 %s22, 2
        // Predicated region
        $region53: #{tpu_custom_call.1} parent=51 // pred_check
          %p438 = pneg %p132
        $region54: #{tpu_custom_call.1} parent=51 // pred_check_branch
          %440 = sbr.rel (%p438) target = $region56
        $region55: #{tpu_custom_call.1} parent=51 // pred_region
          %s441 = sand.u32 %s117, 1
          %s442 = scalar_lea.sflag [#allocation4], %s441
          %s443 = sand.u32 %s117, 1
          %s444 = smul.addr %s443, 40
          %s445 = scalar_lea.vmem [#allocation7], %s444
          %446 = dma.done %s442, 640
        $region56: #{tpu_custom_call.1} parent=51 // pred_fallthru
          _
        // Predicated region
        $region57: #{tpu_custom_call.1} parent=51 // pred_check
          %p447 = pneg %p160
        $region58: #{tpu_custom_call.1} parent=51 // pred_check_branch
          %449 = sbr.rel (%p447) target = $region60
        $region59: #{tpu_custom_call.1} parent=51 // pred_region
          %s450 = sand.u32 %s145, 1
          %s451 = scalar_lea.sflag [#allocation9], %s450
          %s452 = sand.u32 %s145, 1
          %s453 = smul.addr %s452, 40
          %s454 = scalar_lea.vmem [#allocation8], %s453
          %455 = dma.done %s451, 640
        $region60: #{tpu_custom_call.1} parent=51 // pred_fallthru
          _
      $region52: #{tpu_custom_call.1} parent=5 // pred_fallthru
        _
    $region6: #{tpu_custom_call.1} parent=1 // loop_footer
      %s26 = sadd.s32 1, %s22
    $region7: #{tpu_custom_call.1} parent=1 // loop_footer_branch
      %21 = sbr.rel target = $region3
    $region8: #{tpu_custom_call.1} parent=1 // loop_exit
      _
    %456 = vsyncpa [#allocation3], 1
    %s457 = scalar_lea.sflag [#allocation3], 1
    %458 = vsyncpa %s457, 1
    %459 = vsyncpa [#allocation6], 1
    %s460 = scalar_lea.sflag [#allocation6], 1
    %461 = vsyncpa %s460, 1
    %462 = vsyncpa [#allocation4], 1
    %s463 = scalar_lea.sflag [#allocation4], 1
    %464 = vsyncpa %s463, 1
    %465 = vsyncpa [#allocation9], 1
    %s466 = scalar_lea.sflag [#allocation9], 1
    %467 = vsyncpa %s466, 1

</llo_original>
